<compile_context>
chip_gen: v7x
topology: tpu7x:2x2x1
jax: 0.10.0
libtpu: 0.0.40
codegen_flags: <defaults>
</compile_context>

<pallas_src>
import jax
import jax.numpy as jnp
from jax import lax
from jax.experimental import pallas as pl
from jax.experimental.pallas import tpu as pltpu


def _round_up(x, m):
    return ((x + m - 1) // m) * m


def rbf_kernel(x_ref, c_ref, cn_ref, o_ref):
    """One batch tile of the RBF layer.

    x_ref:  (TM, D)      input rows (f32)
    c_ref:  (O_pad, D)   centers, resident across the grid (f32)
    cn_ref: (1, O_pad)   precomputed ||c||^2 per center (f32)
    o_ref:  (TM, O_pad)  output tile
    """
    x = x_ref[...]                                            # (TM, D)
    c = c_ref[...]                                            # (O_pad, D)

    # MXU: g[m, o] = sum_d x[m, d] * c[o, d]  (contract last dims, f32 acc).
    g = lax.dot_general(
        x, c, (((1,), (1,)), ((), ())), preferred_element_type=jnp.float32
    )                                                         # (TM, O_pad)

    x_norm = jnp.sum(x * x, axis=-1, keepdims=True)           # (TM, 1)
    sq = x_norm + cn_ref[...] - 2.0 * g                       # (TM, O_pad)
    sq = jnp.maximum(sq, 0.0)                                 # cancellation guard
    o_ref[...] = jnp.exp(-jnp.sqrt(sq)).astype(o_ref.dtype)


def rbf_forward(x, centers, *, tile_m=256):
    """x: (N, D) float32, centers: (O, D) float32 -> (N, O) float32."""
    x = x.astype(jnp.float32)
    centers = centers.astype(jnp.float32)
    N, D = x.shape
    O, D2 = centers.shape
    assert D == D2, "in_features mismatch"

    # Lane-dense output: pad out_features to a multiple of 128.
    o_pad = max(128, _round_up(O, 128))
    # Batch tile: multiple of 8 (sublane), no larger than the (padded) batch.
    tm = min(_round_up(tile_m, 8), _round_up(N, 8))
    n_pad = _round_up(N, tm)

    x_p = x if n_pad == N else jnp.pad(x, ((0, n_pad - N), (0, 0)))
    c_p = centers if o_pad == O else jnp.pad(centers, ((0, o_pad - O), (0, 0)))
    # ||c||^2 computed once, shaped (1, O_pad) for broadcast inside the kernel.
    c_norms = jnp.sum(c_p * c_p, axis=-1, keepdims=True).T    # (1, O_pad)

    grid = (n_pad // tm,)
    out = pl.pallas_call(
        rbf_kernel,
        out_shape=jax.ShapeDtypeStruct((n_pad, o_pad), jnp.float32),
        grid_spec=pltpu.PrefetchScalarGridSpec(
            num_scalar_prefetch=0,
            grid=grid,
            in_specs=[
                # x: tiled over the batch axis, full feature axis.
                pl.BlockSpec((tm, D), lambda i: (i, 0)),
                # centers: constant block index -> resident across the grid.
                pl.BlockSpec((o_pad, D), lambda i: (0, 0)),
                # precomputed ||c||^2.
                pl.BlockSpec((1, o_pad), lambda i: (0, 0)),
            ],
            out_specs=pl.BlockSpec((tm, o_pad), lambda i: (i, 0)),
        ),
        compiler_params=pltpu.CompilerParams(
            dimension_semantics=("parallel",)
        ),
    )(x_p, c_p, c_norms)
    # Slice off batch / out_features padding.
    return out[:N, :O]
    # TODO(synk): for very large out_features, add a second grid axis over
    # centers (tile_o multiple of 128) instead of keeping all centers resident.


if __name__ == "__main__":
    key = jax.random.PRNGKey(0)
    k_x, k_c = jax.random.split(key)

    # Small shapes consistent with the module: batch=8, in_features=32, out_features=16.
    N, in_features, out_features = 8, 32, 16

    x = jax.random.normal(k_x, (N, in_features), dtype=jnp.float32)
    # Deterministic parameter init matching centers.data.uniform_(-1, 1).
    centers = jax.random.uniform(
        k_c, (out_features, in_features), dtype=jnp.float32, minval=-1.0, maxval=1.0
    )

    out = rbf_forward(x, centers)
    out = jax.block_until_ready(out)

    # Reference check in plain JAX (same math as the PyTorch module).
    diff = x[:, None, :] - centers[None, :, :]
    ref = jnp.exp(-jnp.sqrt(jnp.sum(diff * diff, axis=-1)))
    assert out.shape == (N, out_features)
    assert jnp.allclose(out, ref, atol=1e-5, rtol=1e-5)

    print("KERNEL_OK")
</pallas_src>

<mosaic_0001>
module attributes {stable_mosaic.version = 11 : i64} {
  func.func @rbf_kernel(%arg0: i32, %arg1: memref<8x32xf32, #tpu.memory_space<vmem>>, %arg2: memref<128x32xf32, #tpu.memory_space<vmem>>, %arg3: memref<1x128xf32, #tpu.memory_space<vmem>>, %arg4: memref<8x128xf32, #tpu.memory_space<vmem>>) attributes {dimension_semantics = [#tpu.dimension_semantics<parallel>], iteration_bounds = array<i64: 1>, scalar_prefetch = 0 : i64, scratch_operands = 0 : i64, tpu.core_type = #tpu.core_type<tc>, window_params = [{transform_indices = @transform_0, window_bounds = array<i64: 8, 32>}, {pipeline_mode = #tpu.pipeline_mode<synchronous>, transform_indices = @transform_1, window_bounds = array<i64: 128, 32>}, {pipeline_mode = #tpu.pipeline_mode<synchronous>, transform_indices = @transform_2, window_bounds = array<i64: 1, 128>}, {transform_indices = @transform_3, window_bounds = array<i64: 8, 128>}]} {
    %c0 = arith.constant 0 : index
    %c0_0 = arith.constant 0 : index
    %0 = vector.load %arg1[%c0, %c0_0] : memref<8x32xf32, #tpu.memory_space<vmem>>, vector<8x32xf32>
    %c0_1 = arith.constant 0 : index
    %c0_2 = arith.constant 0 : index
    %1 = vector.load %arg2[%c0_1, %c0_2] : memref<128x32xf32, #tpu.memory_space<vmem>>, vector<128x32xf32>
    %cst = arith.constant dense<0.000000e+00> : vector<8x128xf32>
    %2 = tpu.matmul %0, %1, %cst {dimension_numbers = #tpu.dot_dimension_numbers<[1], [1], [0], [0], [0, 0, 1, 0], [], []>} : vector<8x32xf32>, vector<128x32xf32>, vector<8x128xf32> -> vector<8x128xf32>
    %3 = arith.mulf %0, %0 : vector<8x32xf32>
    %cst_3 = arith.constant dense<0.000000e+00> : vector<8xf32>
    %4 = vector.multi_reduction <add>, %3, %cst_3 [1] : vector<8x32xf32> to vector<8xf32>
    %5 = vector.shape_cast %4 : vector<8xf32> to vector<8x1xf32>
    %c0_4 = arith.constant 0 : index
    %c0_5 = arith.constant 0 : index
    %6 = vector.load %arg3[%c0_4, %c0_5] : memref<1x128xf32, #tpu.memory_space<vmem>>, vector<1x128xf32>
    %7 = vector.broadcast %5 : vector<8x1xf32> to vector<8x128xf32>
    %8 = vector.broadcast %6 : vector<1x128xf32> to vector<8x128xf32>
    %9 = arith.addf %7, %8 : vector<8x128xf32>
    %cst_6 = arith.constant 2.000000e+00 : f32
    %10 = vector.broadcast %cst_6 : f32 to vector<8x128xf32>
    %11 = arith.mulf %10, %2 : vector<8x128xf32>
    %12 = arith.subf %9, %11 : vector<8x128xf32>
    %cst_7 = arith.constant 0.000000e+00 : f32
    %13 = vector.broadcast %cst_7 : f32 to vector<8x128xf32>
    %14 = arith.maximumf %12, %13 : vector<8x128xf32>
    %15 = math.sqrt %14 : vector<8x128xf32>
    %cst_8 = arith.constant 0.000000e+00 : f32
    %16 = vector.broadcast %cst_8 : f32 to vector<8x128xf32>
    %17 = arith.subf %16, %15 : vector<8x128xf32>
    %18 = math.exp %17 : vector<8x128xf32>
    %c0_9 = arith.constant 0 : index
    %c0_10 = arith.constant 0 : index
    %19 = vector.load %arg4[%c0_9, %c0_10] : memref<8x128xf32, #tpu.memory_space<vmem>>, vector<8x128xf32>
    tpu.vector_store %arg4[%c0_9, %c0_10], %18 {strides = array<i32>} : memref<8x128xf32, #tpu.memory_space<vmem>>, vector<8x128xf32>,
    return
  }
  func.func @transform_0(%arg0: i32) -> (i32, i32) {
    %c0_i32 = arith.constant 0 : i32
    %c0_i32_0 = arith.constant 0 : i32
    return %arg0, %c0_i32 : i32, i32
  }
  func.func @transform_1(%arg0: i32) -> (i32, i32) {
    %c0_i32 = arith.constant 0 : i32
    %c0_i32_0 = arith.constant 0 : i32
    %c0_i32_1 = arith.constant 0 : i32
    return %c0_i32, %c0_i32_0 : i32, i32
  }
  func.func @transform_2(%arg0: i32) -> (i32, i32) {
    %c0_i32 = arith.constant 0 : i32
    %c0_i32_0 = arith.constant 0 : i32
    %c0_i32_1 = arith.constant 0 : i32
    return %c0_i32, %c0_i32_0 : i32, i32
  }
  func.func @transform_3(%arg0: i32) -> (i32, i32) {
    %c0_i32 = arith.constant 0 : i32
    %c0_i32_0 = arith.constant 0 : i32
    return %arg0, %c0_i32 : i32, i32
  }
}

</mosaic_0001>

<llo_original>
// kernel: tpu_custom_call.1
$region0: #{tpu_custom_call.1}
  #allocation0 [shape = 'u32[]', space=smem, size = 0x4, offset = 0x4, fixed_abs, tag = 'smem constant byte address 0x4 - core index']
  #allocation1 [shape = 'u32[144,128]{1,0:T(1,128)}', space=vmem, size = 0x12000, scoped, tag = 'internal scratch']
  %s0 = inlined_call_operand.vmem [shape: f32[8,32], index: 0, kind: input, shape index: {}]
  %s1 = inlined_call_operand.vmem [shape: f32[128,32], index: 1, kind: input, shape index: {}]
  %s2 = inlined_call_operand.vmem [shape: f32[1,128], index: 2, kind: input, shape index: {}]
  %s3 = inlined_call_operand.hbm [shape: f32[8,128], index: 3, kind: output, shape index: {}]
  %s4 = sld [smem:[#allocation0]]
  $region22: #{tpu_custom_call.1} parent=0
    _
  %s6 = ssub.s32 1, %s4
  %s7 = scalar_select 0, %s6, %s4
  $region1: #{tpu_custom_call.1} parent=0
    #allocation2 [shape = 'u8[4096]{0}', space=vmem, size = 0x1000, scoped, tag = 'output window, operand 0, single buffered']
    #allocation3 [shape = 's32[1]{0}', space=sflag, size = 0x4, scoped, tag = 'scoped memory for tpu_custom_call.1']
    %8 = vsyncpa [#allocation3], 0
    // Predicated region
    $region2: #{tpu_custom_call.1} parent=1 // pred_check
      _
    $region3: #{tpu_custom_call.1} parent=1 // pred_check_branch
      %10 = sbr.rel (0) target = $region5
    $region4: #{tpu_custom_call.1} parent=1 // pred_region
      _
    $region5: #{tpu_custom_call.1} parent=1 // pred_fallthru
      _
    // Predicated region
    $region6: #{tpu_custom_call.1} parent=1 // pred_check
      _
    $region7: #{tpu_custom_call.1} parent=1 // pred_check_branch
      %12 = sbr.rel (0) target = $region9
    $region8: #{tpu_custom_call.1} parent=1 // pred_region
      _
    $region9: #{tpu_custom_call.1} parent=1 // pred_fallthru
      _
    // Predicated region
    $region10: #{tpu_custom_call.1} parent=1 // pred_check
      _
    $region11: #{tpu_custom_call.1} parent=1 // pred_check_branch
      %14 = sbr.rel (0) target = $region13
    $region12: #{tpu_custom_call.1} parent=1 // pred_region
      _
    $region13: #{tpu_custom_call.1} parent=1 // pred_fallthru
      _
    %v15 = vld [vmem:[%s0] sm:$0xff]
    %v16 = vld [vmem:[%s1] sm:$0xff]
    %v17 = vld [vmem:[%s1 + $0x8] sm:$0xff]
    %v18 = vld [vmem:[%s1 + $0x10] sm:$0xff]
    %v19 = vld [vmem:[%s1 + $0x18] sm:$0xff]
    %v20 = vld [vmem:[%s1 + $0x20] sm:$0xff]
    %v21 = vld [vmem:[%s1 + $0x28] sm:$0xff]
    %v22 = vld [vmem:[%s1 + $0x30] sm:$0xff]
    %v23 = vld [vmem:[%s1 + $0x38] sm:$0xff]
    %v24 = vld [vmem:[%s1 + $0x40] sm:$0xff]
    %v25 = vld [vmem:[%s1 + $0x48] sm:$0xff]
    %v26 = vld [vmem:[%s1 + $0x50] sm:$0xff]
    %v27 = vld [vmem:[%s1 + $0x58] sm:$0xff]
    %v28 = vld [vmem:[%s1 + $0x60] sm:$0xff]
    %v29 = vld [vmem:[%s1 + $0x68] sm:$0xff]
    %v30 = vld [vmem:[%s1 + $0x70] sm:$0xff]
    %v31 = vld [vmem:[%s1 + $0x78] sm:$0xff]
    %vm32 = vcmask 261120
    %v34 = vsel %vm32, %v15, 0
    %v37 = vsel %vm32, %v16, 0
    %v40 = vsel %vm32, %v17, 0
    %v43 = vsel %vm32, %v18, 0
    %v46 = vsel %vm32, %v19, 0
    %v49 = vsel %vm32, %v20, 0
    %v52 = vsel %vm32, %v21, 0
    %v55 = vsel %vm32, %v22, 0
    %v58 = vsel %vm32, %v23, 0
    %v61 = vsel %vm32, %v24, 0
    %v64 = vsel %vm32, %v25, 0
    %v67 = vsel %vm32, %v26, 0
    %v70 = vsel %vm32, %v27, 0
    %v73 = vsel %vm32, %v28, 0
    %v76 = vsel %vm32, %v29, 0
    %v79 = vsel %vm32, %v30, 0
    %v82 = vsel %vm32, %v31, 0
    %84 = vmatprep.subr.mxu0 0.0
    %85 = vmatpush1.xpose.msra.mxu0 %v37
    %86 = vmatprep.subr.mxu0 0.0
    %87 = vmatpush1.xpose.msra.mxu0 %v40
    %88 = vmatprep.subr.mxu0 0.0
    %89 = vmatpush1.xpose.msra.mxu0 %v43
    %90 = vmatprep.subr.mxu0 0.0
    %91 = vmatpush1.xpose.msra.mxu0 %v46
    %92 = vmatprep.subr.mxu0 0.0
    %93 = vmatpush1.xpose.msra.mxu0 %v49
    %94 = vmatprep.subr.mxu0 0.0
    %95 = vmatpush1.xpose.msra.mxu0 %v52
    %96 = vmatprep.subr.mxu0 0.0
    %97 = vmatpush1.xpose.msra.mxu0 %v55
    %98 = vmatprep.subr.mxu0 0.0
    %99 = vmatpush1.xpose.msra.mxu0 %v58
    %100 = vmatprep.subr.mxu0 0.0
    %101 = vmatpush1.xpose.msra.mxu0 %v61
    %102 = vmatprep.subr.mxu0 0.0
    %103 = vmatpush1.xpose.msra.mxu0 %v64
    %104 = vmatprep.subr.mxu0 0.0
    %105 = vmatpush1.xpose.msra.mxu0 %v67
    %106 = vmatprep.subr.mxu0 0.0
    %107 = vmatpush1.xpose.msra.mxu0 %v70
    %108 = vmatprep.subr.mxu0 0.0
    %109 = vmatpush1.xpose.msra.mxu0 %v73
    %110 = vmatprep.subr.mxu0 0.0
    %111 = vmatpush1.xpose.msra.mxu0 %v76
    %112 = vmatprep.subr.mxu0 0.0
    %113 = vmatpush1.xpose.msra.mxu0 %v79
    %114 = vmatprep.subr.mxu0 0.0
    %115 = vmatpush1.xpose.msra.mxu0 %v82
    %116 = vmatprep.subr.mxu0 0.0
    %117 = vmatpush1.xpose.msra.mxu0 0.0
    %118 = vmatprep.subr.mxu0 0.0
    %119 = vmatpush1.xpose.msra.mxu0 0.0
    %120 = vmatprep.subr.mxu0 0.0
    %121 = vmatpush1.xpose.msra.mxu0 0.0
    %122 = vmatprep.subr.mxu0 0.0
    %123 = vmatpush1.xpose.msra.mxu0 0.0
    %124 = vmatprep.subr.mxu0 0.0
    %125 = vmatpush1.xpose.msra.mxu0 0.0
    %126 = vmatprep.subr.mxu0 0.0
    %127 = vmatpush1.xpose.msra.mxu0 0.0
    %128 = vmatprep.subr.mxu0 0.0
    %129 = vmatpush1.xpose.msra.mxu0 0.0
    %130 = vmatprep.subr.mxu0 0.0
    %131 = vmatpush1.xpose.msra.mxu0 0.0
    %132 = vmatprep.subr.mxu0 0.0
    %133 = vmatpush1.xpose.msra.mxu0 0.0
    %134 = vmatprep.subr.mxu0 0.0
    %135 = vmatpush1.xpose.msra.mxu0 0.0
    %136 = vmatprep.subr.mxu0 0.0
    %137 = vmatpush1.xpose.msra.mxu0 0.0
    %138 = vmatprep.subr.mxu0 0.0
    %139 = vmatpush1.xpose.msra.mxu0 0.0
    %140 = vmatprep.subr.mxu0 0.0
    %141 = vmatpush1.xpose.msra.mxu0 0.0
    %142 = vmatprep.subr.mxu0 0.0
    %143 = vmatpush1.xpose.msra.mxu0 0.0
    %144 = vmatprep.subr.mxu0 0.0
    %145 = vmatpush1.xpose.msra.mxu0 0.0
    %146 = vmatprep.subr.mxu0 0.0
    %147 = vmatpush1.xpose.msra.mxu0 0.0
    %148 = vmatprep.mubr.f32.mxu0 0.0
    %149 = vmatmul.mubr.f32.gmra.mrb[0].mxu0 %v34
    %v150 = vpop.f32.mrb[0].mxu0
    %v151 = vadd.f32 0.0, %v150
    %v152 = vpop.f32.mrb[0].mxu0
    %153 = vdwg.mxu0
    %v154 = vmul.f32 %v15, %v15
    %v155 = vsel %vm32, %v154, 0.0
    %156 = vadd.xlane.f32.xlu0 %v155
    %v157 = vpop.xlane.xlu0 %156
    %v158 = vld [vmem:[%s2] sm:$0x1]
    %v160 = vlaneseq
    %v161 = vshrl.u32 %v160, 7
    %v162 = vsub.s32 0, %v161
    %v163 = vrot.slane %v158, %v162
    %v165 = vadd.f32 %v157, %v163
    %v166 = vmul.f32 %v151, 2.0
    %v167 = vsub.f32 %v165, %v166
    %v168 = vmax.f32 %v167, 0.0
    %v169 = vrsqrt.pop %v168
    %v170 = vmul.f32 %v168, %v169
    %vm171 = vcmp.eq.f32.partialorder %v168, inf
    %v172 = vsel %vm171, %v168, %v170
    %vm173 = vcmp.eq.f32.partialorder %v168, 0.0
    %v174 = vand.u32 %v168, 2147483648
    %v175 = vsel %vm173, %v174, %v172
    %v176 = vsub.f32 0.0, %v175
    %v177 = vmul.f32 %v176, 1.442695
    %v178 = vpow.pop %v177
    %179 = vst [vmem:[#allocation2] sm:$0xff] %v178
    // Predicated region
    $region14: #{tpu_custom_call.1} parent=1 // pred_check
      _
    $region15: #{tpu_custom_call.1} parent=1 // pred_check_branch
      %181 = sbr.rel (0) target = $region17
    $region16: #{tpu_custom_call.1} parent=1 // pred_region
      %s183 = ssub.s32 128, 128
      %184 = vsyncadd [#allocation3], %s183
      %s186 = sshll.u32 [#allocation2], 4
      %s187 = int_to_ptr.vmem [resolvable:$true] %s186
      %189 = dma.vmem_to_hbm [thread:$0]  %s187, 128, %s3, [#allocation3]
    $region17: #{tpu_custom_call.1} parent=1 // pred_fallthru
      _
    // Predicated region
    $region18: #{tpu_custom_call.1} parent=1 // pred_check
      _
    $region19: #{tpu_custom_call.1} parent=1 // pred_check_branch
      %191 = sbr.rel (0) target = $region21
    $region20: #{tpu_custom_call.1} parent=1 // pred_region
      %192 = dma.done [#allocation3], 128
    $region21: #{tpu_custom_call.1} parent=1 // pred_fallthru
      _
    %193 = vsyncpa [#allocation3], 1

</llo_original>
